<compile_context>
chip_gen: v6e
topology: v6e:2x2x1
jax: 0.10.0
libtpu: 0.0.40
codegen_flags: <defaults>
</compile_context>

<pallas_src>
import functools

import jax
import jax.numpy as jnp
from jax import lax
from jax.experimental import pallas as pl
from jax.experimental.pallas import tpu as pltpu

IN_FEATURES = 48
HEAD_DIM = 8
QKV_DIM = 3 * HEAD_DIM          # 24
DEFAULT_BLOCK_B = 1024          # rows per grid step (multiple of 8)


def _round_up(n, m):
    return (n + m - 1) // m * m


def _qkv_am_kernel(x_ref, wqkv_ref, v_ref, am_ref, am_acc):
    """Pass 1: fused QKV matmul per B-tile, stream v, reduce am over all tiles."""
    i = pl.program_id(0)

    @pl.when(i == 0)
    def _():
        am_acc[...] = jnp.zeros_like(am_acc)

    x = x_ref[...]                                    # (TB, 48)
    wqkv = wqkv_ref[...]                              # (48, 24) = [Wq^T | Wk^T | Wv^T]
    qkv = jnp.dot(x, wqkv, preferred_element_type=jnp.float32)   # one MXU pass, (TB, 24)

    q = qkv[:, 0:HEAD_DIM]                            # (TB, 8)
    k = qkv[:, HEAD_DIM:2 * HEAD_DIM]                 # (TB, 8)
    v = qkv[:, 2 * HEAD_DIM:3 * HEAD_DIM]             # (TB, 8)

    v_ref[...] = v                                    # stash v for pass 2 (32 B/row)

    # Partial q^T @ k: contract over the batch-tile axis (axis 0 of both) -> (8, 8).
    am_acc[...] += lax.dot_general(
        q, k,
        dimension_numbers=(((0,), (0,)), ((), ())),
        preferred_element_type=jnp.float32,
    )

    @pl.when(i == pl.num_programs(0) - 1)
    def _():
        am = am_acc[...] * (HEAD_DIM ** -0.5)
        am_max = jnp.max(am, axis=1, keepdims=True)           # softmax over dim=1
        am_exp = jnp.exp(am - am_max)
        am_sum = jnp.sum(am_exp, axis=1, keepdims=True)
        am_ref[...] = am_exp * pl.reciprocal(am_sum, approx=False)


def _out_kernel(v_ref, am_ref, wo_ref, o_ref):
    """Pass 2: per B-tile, Z = v @ am ; out = Z @ Wo^T."""
    z = jnp.dot(v_ref[...], am_ref[...], preferred_element_type=jnp.float32)     # (TB, 8)
    o_ref[...] = jnp.dot(z, wo_ref[...], preferred_element_type=jnp.float32)     # (TB, 48)


def prepare_ultimus_params(wq, wk, wv, wo):
    """One-time parameter prep: fuse QKV weights and pre-transpose to (in, out)."""
    wqkv_t = jnp.concatenate([wq.T, wk.T, wv.T], axis=1)   # (48, 24)
    wo_t = wo.T                                            # (8, 48)
    return wqkv_t, wo_t


@functools.partial(jax.jit, static_argnames=("block_b",))
def ultimus_forward(x, wqkv_t, wo_t, *, block_b=DEFAULT_BLOCK_B):
    """x: (B, 48) f32. wqkv_t: (48, 24). wo_t: (8, 48). Returns (B, 48) f32."""
    B = x.shape[0]
    tb = _round_up(min(block_b, _round_up(B, 8)), 8)
    b_pad = _round_up(B, tb)
    nb = b_pad // tb
    if b_pad != B:
        # Zero rows contribute nothing to am (q=k=0) and produce zero output rows,
        # which are sliced off below -> exact.
        x = jnp.pad(x, ((0, b_pad - B), (0, 0)))

    # Pass 1: v (streamed per-tile) + softmaxed am (resident accumulator output).
    v, am = pl.pallas_call(
        _qkv_am_kernel,
        out_shape=(jax.ShapeDtypeStruct((b_pad, HEAD_DIM), jnp.float32),
                   jax.ShapeDtypeStruct((HEAD_DIM, HEAD_DIM), jnp.float32)),
        grid_spec=pltpu.PrefetchScalarGridSpec(
            num_scalar_prefetch=0,
            grid=(nb,),
            in_specs=[pl.BlockSpec((tb, IN_FEATURES), lambda i: (i, 0)),
                      pl.BlockSpec((IN_FEATURES, QKV_DIM), lambda i: (0, 0))],
            out_specs=(pl.BlockSpec((tb, HEAD_DIM), lambda i: (i, 0)),
                       pl.BlockSpec((HEAD_DIM, HEAD_DIM), lambda i: (0, 0))),
            scratch_shapes=[pltpu.VMEM((HEAD_DIM, HEAD_DIM), jnp.float32)]),
        compiler_params=pltpu.CompilerParams(
            dimension_semantics=("arbitrary",)),   # global am reduction over B tiles
    )(x, wqkv_t)

    # Pass 2: fully parallel over B tiles (shards across both TCs on v7x).
    out = pl.pallas_call(
        _out_kernel,
        out_shape=jax.ShapeDtypeStruct((b_pad, IN_FEATURES), jnp.float32),
        grid_spec=pltpu.PrefetchScalarGridSpec(
            num_scalar_prefetch=0,
            grid=(nb,),
            in_specs=[pl.BlockSpec((tb, HEAD_DIM), lambda i: (i, 0)),
                      pl.BlockSpec((HEAD_DIM, HEAD_DIM), lambda i: (0, 0)),
                      pl.BlockSpec((HEAD_DIM, IN_FEATURES), lambda i: (0, 0))],
            out_specs=pl.BlockSpec((tb, IN_FEATURES), lambda i: (i, 0))),
        compiler_params=pltpu.CompilerParams(
            dimension_semantics=("parallel",)),
    )(v, am, wo_t)

    if b_pad != B:
        out = out[:B]
    return out


def ultimus_reference(x, wq, wk, wv, wo):
    q = x @ wq.T
    k = x @ wk.T
    v = x @ wv.T
    am = jnp.swapaxes(q, -1, -2) @ k
    am = am * (HEAD_DIM ** -0.5)
    am = jax.nn.softmax(am, axis=1)
    z = v @ am
    return z @ wo.T


if __name__ == "__main__":
    key = jax.random.PRNGKey(0)
    kx, kq, kk, kv, ko, kx2 = jax.random.split(key, 6)

    # nn.Linear default init mimic: U(-1/sqrt(in), 1/sqrt(in)); all layers bias=False.
    bound_in = 1.0 / (IN_FEATURES ** 0.5)
    bound_hd = 1.0 / (HEAD_DIM ** 0.5)
    wq = jax.random.uniform(kq, (HEAD_DIM, IN_FEATURES), jnp.float32, -bound_in, bound_in)
    wk = jax.random.uniform(kk, (HEAD_DIM, IN_FEATURES), jnp.float32, -bound_in, bound_in)
    wv = jax.random.uniform(kv, (HEAD_DIM, IN_FEATURES), jnp.float32, -bound_in, bound_in)
    wo = jax.random.uniform(ko, (IN_FEATURES, HEAD_DIM), jnp.float32, -bound_hd, bound_hd)

    wqkv_t, wo_t = prepare_ultimus_params(wq, wk, wv, wo)   # one-time prep

    # Small single-tile check (B=8).
    B = 8
    x = jax.random.normal(kx, (B, IN_FEATURES), dtype=jnp.float32)
    out = jax.block_until_ready(ultimus_forward(x, wqkv_t, wo_t))
    ref = ultimus_reference(x, wq, wk, wv, wo)
    assert out.shape == (B, IN_FEATURES)
    assert jnp.allclose(out, ref, atol=1e-5, rtol=1e-5), "single-tile mismatch vs reference"

    # Multi-tile check: B=44 with a 16-row tile -> 3 grid steps through the am
    # reduction plus zero-padding of the last tile.
    B2 = 44
    x2 = jax.random.normal(kx2, (B2, IN_FEATURES), dtype=jnp.float32)
    out2 = jax.block_until_ready(ultimus_forward(x2, wqkv_t, wo_t, block_b=16))
    ref2 = ultimus_reference(x2, wq, wk, wv, wo)
    assert out2.shape == (B2, IN_FEATURES)
    assert jnp.allclose(out2, ref2, atol=1e-5, rtol=1e-5), "multi-tile mismatch vs reference"

    print("KERNEL_OK")
</pallas_src>

<mosaic_0001>
module attributes {stable_mosaic.version = 11 : i64} {
  func.func @_qkv_am_kernel(%arg0: i32, %arg1: memref<8x48xf32, #tpu.memory_space<vmem>>, %arg2: memref<48x24xf32, #tpu.memory_space<vmem>>, %arg3: memref<8x8xf32, #tpu.memory_space<vmem>>, %arg4: memref<8x8xf32, #tpu.memory_space<vmem>>, %arg5: memref<8x8xf32, #tpu.memory_space<vmem>>) attributes {dimension_semantics = [#tpu.dimension_semantics<arbitrary>], iteration_bounds = array<i64: 1>, scalar_prefetch = 0 : i64, scratch_operands = 1 : i64, tpu.core_type = #tpu.core_type<tc>, window_params = [{transform_indices = @transform_0, window_bounds = array<i64: 8, 48>}, {pipeline_mode = #tpu.pipeline_mode<synchronous>, transform_indices = @transform_1, window_bounds = array<i64: 48, 24>}, {transform_indices = @transform_2, window_bounds = array<i64: 8, 8>}, {pipeline_mode = #tpu.pipeline_mode<synchronous>, transform_indices = @transform_3, window_bounds = array<i64: 8, 8>}]} {
    %c0_i32 = arith.constant 0 : i32
    %0 = arith.cmpi eq, %arg0, %c0_i32 : i32
    %1 = arith.extui %0 : i1 to i32
    %c0_i32_0 = arith.constant 0 : i32
    %2 = arith.cmpi ne, %1, %c0_i32_0 : i32
    scf.if %2 {
      %cst_13 = arith.constant 0.000000e+00 : f32
      %17 = vector.broadcast %cst_13 : f32 to vector<8x8xf32>
      %c0_14 = arith.constant 0 : index
      %c0_15 = arith.constant 0 : index
      %18 = vector.load %arg5[%c0_14, %c0_15] : memref<8x8xf32, #tpu.memory_space<vmem>>, vector<8x8xf32>
      tpu.vector_store %arg5[%c0_14, %c0_15], %17 {strides = array<i32>} : memref<8x8xf32, #tpu.memory_space<vmem>>, vector<8x8xf32>,
    } else {
    }
    %c0 = arith.constant 0 : index
    %c0_1 = arith.constant 0 : index
    %3 = vector.load %arg1[%c0, %c0_1] : memref<8x48xf32, #tpu.memory_space<vmem>>, vector<8x48xf32>
    %c0_2 = arith.constant 0 : index
    %c0_3 = arith.constant 0 : index
    %4 = vector.load %arg2[%c0_2, %c0_3] : memref<48x24xf32, #tpu.memory_space<vmem>>, vector<48x24xf32>
    %cst = arith.constant dense<0.000000e+00> : vector<8x24xf32>
    %5 = tpu.matmul %3, %4, %cst {dimension_numbers = #tpu.dot_dimension_numbers<[1], [0], [0], [1], [0, 0, 1, 1], [], []>} : vector<8x48xf32>, vector<48x24xf32>, vector<8x24xf32> -> vector<8x24xf32>
    %6 = vector.extract_strided_slice %5 {offsets = [0, 0], sizes = [8, 8], strides = [1, 1]} : vector<8x24xf32> to vector<8x8xf32>
    %7 = vector.extract_strided_slice %5 {offsets = [0, 8], sizes = [8, 8], strides = [1, 1]} : vector<8x24xf32> to vector<8x8xf32>
    %8 = vector.extract_strided_slice %5 {offsets = [0, 16], sizes = [8, 8], strides = [1, 1]} : vector<8x24xf32> to vector<8x8xf32>
    %c0_4 = arith.constant 0 : index
    %c0_5 = arith.constant 0 : index
    %9 = vector.load %arg3[%c0_4, %c0_5] : memref<8x8xf32, #tpu.memory_space<vmem>>, vector<8x8xf32>
    tpu.vector_store %arg3[%c0_4, %c0_5], %8 {strides = array<i32>} : memref<8x8xf32, #tpu.memory_space<vmem>>, vector<8x8xf32>,
    %c0_6 = arith.constant 0 : index
    %c0_7 = arith.constant 0 : index
    %10 = vector.load %arg5[%c0_6, %c0_7] : memref<8x8xf32, #tpu.memory_space<vmem>>, vector<8x8xf32>
    %cst_8 = arith.constant dense<0.000000e+00> : vector<8x8xf32>
    %11 = tpu.matmul %6, %7, %cst_8 {dimension_numbers = #tpu.dot_dimension_numbers<[0], [0], [1], [1], [0, 1, 1, 1], [], []>} : vector<8x8xf32>, vector<8x8xf32>, vector<8x8xf32> -> vector<8x8xf32>
    %12 = arith.addf %10, %11 : vector<8x8xf32>
    %c0_9 = arith.constant 0 : index
    %c0_10 = arith.constant 0 : index
    %13 = vector.load %arg5[%c0_9, %c0_10] : memref<8x8xf32, #tpu.memory_space<vmem>>, vector<8x8xf32>
    tpu.vector_store %arg5[%c0_9, %c0_10], %12 {strides = array<i32>} : memref<8x8xf32, #tpu.memory_space<vmem>>, vector<8x8xf32>,
    %c0_i32_11 = arith.constant 0 : i32
    %14 = arith.cmpi eq, %arg0, %c0_i32_11 : i32
    %15 = arith.extui %14 : i1 to i32
    %c0_i32_12 = arith.constant 0 : i32
    %16 = arith.cmpi ne, %15, %c0_i32_12 : i32
    scf.if %16 {
      %c0_13 = arith.constant 0 : index
      %c0_14 = arith.constant 0 : index
      %17 = vector.load %arg5[%c0_13, %c0_14] : memref<8x8xf32, #tpu.memory_space<vmem>>, vector<8x8xf32>
      %cst_15 = arith.constant 0.353553385 : f32
      %18 = vector.broadcast %cst_15 : f32 to vector<8x8xf32>
      %19 = arith.mulf %17, %18 : vector<8x8xf32>
      %cst_16 = arith.constant dense<0xFF800000> : vector<8xf32>
      %20 = vector.multi_reduction <maximumf>, %19, %cst_16 [1] : vector<8x8xf32> to vector<8xf32>
      %21 = vector.shape_cast %20 : vector<8xf32> to vector<8x1xf32>
      %22 = vector.broadcast %21 : vector<8x1xf32> to vector<8x8xf32>
      %23 = arith.subf %19, %22 : vector<8x8xf32>
      %24 = math.exp %23 : vector<8x8xf32>
      %cst_17 = arith.constant dense<0.000000e+00> : vector<8xf32>
      %25 = vector.multi_reduction <add>, %24, %cst_17 [1] : vector<8x8xf32> to vector<8xf32>
      %26 = vector.shape_cast %25 : vector<8xf32> to vector<8x1xf32>
      %27 = tpu.reciprocal %26 : vector<8x1xf32> -> vector<8x1xf32>
      %28 = vector.broadcast %27 : vector<8x1xf32> to vector<8x8xf32>
      %29 = arith.mulf %24, %28 : vector<8x8xf32>
      %c0_18 = arith.constant 0 : index
      %c0_19 = arith.constant 0 : index
      %30 = vector.load %arg4[%c0_18, %c0_19] : memref<8x8xf32, #tpu.memory_space<vmem>>, vector<8x8xf32>
      tpu.vector_store %arg4[%c0_18, %c0_19], %29 {strides = array<i32>} : memref<8x8xf32, #tpu.memory_space<vmem>>, vector<8x8xf32>,
    } else {
    }
    return
  }
  func.func @transform_0(%arg0: i32) -> (i32, i32) {
    %c0_i32 = arith.constant 0 : i32
    %c0_i32_0 = arith.constant 0 : i32
    return %arg0, %c0_i32 : i32, i32
  }
  func.func @transform_1(%arg0: i32) -> (i32, i32) {
    %c0_i32 = arith.constant 0 : i32
    %c0_i32_0 = arith.constant 0 : i32
    %c0_i32_1 = arith.constant 0 : i32
    return %c0_i32, %c0_i32_0 : i32, i32
  }
  func.func @transform_2(%arg0: i32) -> (i32, i32) {
    %c0_i32 = arith.constant 0 : i32
    %c0_i32_0 = arith.constant 0 : i32
    return %arg0, %c0_i32 : i32, i32
  }
  func.func @transform_3(%arg0: i32) -> (i32, i32) {
    %c0_i32 = arith.constant 0 : i32
    %c0_i32_0 = arith.constant 0 : i32
    %c0_i32_1 = arith.constant 0 : i32
    return %c0_i32, %c0_i32_0 : i32, i32
  }
}

module attributes {stable_mosaic.version = 11 : i64} {
  func.func @_out_kernel(%arg0: i32, %arg1: memref<8x8xf32, #tpu.memory_space<vmem>>, %arg2: memref<8x8xf32, #tpu.memory_space<vmem>>, %arg3: memref<8x48xf32, #tpu.memory_space<vmem>>, %arg4: memref<8x48xf32, #tpu.memory_space<vmem>>) attributes {dimension_semantics = [#tpu.dimension_semantics<parallel>], iteration_bounds = array<i64: 1>, scalar_prefetch = 0 : i64, scratch_operands = 0 : i64, tpu.core_type = #tpu.core_type<tc>, window_params = [{transform_indices = @transform_0, window_bounds = array<i64: 8, 8>}, {pipeline_mode = #tpu.pipeline_mode<synchronous>, transform_indices = @transform_1, window_bounds = array<i64: 8, 8>}, {pipeline_mode = #tpu.pipeline_mode<synchronous>, transform_indices = @transform_2, window_bounds = array<i64: 8, 48>}, {transform_indices = @transform_3, window_bounds = array<i64: 8, 48>}]} {
    %c0 = arith.constant 0 : index
    %c0_0 = arith.constant 0 : index
    %0 = vector.load %arg1[%c0, %c0_0] : memref<8x8xf32, #tpu.memory_space<vmem>>, vector<8x8xf32>
    %c0_1 = arith.constant 0 : index
    %c0_2 = arith.constant 0 : index
    %1 = vector.load %arg2[%c0_1, %c0_2] : memref<8x8xf32, #tpu.memory_space<vmem>>, vector<8x8xf32>
    %cst = arith.constant dense<0.000000e+00> : vector<8x8xf32>
    %2 = tpu.matmul %0, %1, %cst {dimension_numbers = #tpu.dot_dimension_numbers<[1], [0], [0], [1], [0, 0, 1, 1], [], []>} : vector<8x8xf32>, vector<8x8xf32>, vector<8x8xf32> -> vector<8x8xf32>
    %c0_3 = arith.constant 0 : index
    %c0_4 = arith.constant 0 : index
    %3 = vector.load %arg3[%c0_3, %c0_4] : memref<8x48xf32, #tpu.memory_space<vmem>>, vector<8x48xf32>
    %cst_5 = arith.constant dense<0.000000e+00> : vector<8x48xf32>
    %4 = tpu.matmul %2, %3, %cst_5 {dimension_numbers = #tpu.dot_dimension_numbers<[1], [0], [0], [1], [0, 0, 1, 1], [], []>} : vector<8x8xf32>, vector<8x48xf32>, vector<8x48xf32> -> vector<8x48xf32>
    %c0_6 = arith.constant 0 : index
    %c0_7 = arith.constant 0 : index
    %5 = vector.load %arg4[%c0_6, %c0_7] : memref<8x48xf32, #tpu.memory_space<vmem>>, vector<8x48xf32>
    tpu.vector_store %arg4[%c0_6, %c0_7], %4 {strides = array<i32>} : memref<8x48xf32, #tpu.memory_space<vmem>>, vector<8x48xf32>,
    return
  }
  func.func @transform_0(%arg0: i32) -> (i32, i32) {
    %c0_i32 = arith.constant 0 : i32
    %c0_i32_0 = arith.constant 0 : i32
    return %arg0, %c0_i32 : i32, i32
  }
  func.func @transform_1(%arg0: i32) -> (i32, i32) {
    %c0_i32 = arith.constant 0 : i32
    %c0_i32_0 = arith.constant 0 : i32
    %c0_i32_1 = arith.constant 0 : i32
    return %c0_i32, %c0_i32_0 : i32, i32
  }
  func.func @transform_2(%arg0: i32) -> (i32, i32) {
    %c0_i32 = arith.constant 0 : i32
    %c0_i32_0 = arith.constant 0 : i32
    %c0_i32_1 = arith.constant 0 : i32
    return %c0_i32, %c0_i32_0 : i32, i32
  }
  func.func @transform_3(%arg0: i32) -> (i32, i32) {
    %c0_i32 = arith.constant 0 : i32
    %c0_i32_0 = arith.constant 0 : i32
    return %arg0, %c0_i32 : i32, i32
  }
}

</mosaic_0001>

<llo_original>
// kernel: ultimus_forward.3
$region0: #{ultimus_forward.3}
  #allocation0 [shape = 'u32[]', space=smem, size = 0x4, offset = 0x4, fixed_abs, tag = 'smem constant byte address 0x4 - core index']
  #allocation1 [shape = 'u32[144,128]{1,0:T(1,128)}', space=vmem, size = 0x12000, scoped, tag = 'internal scratch']
  %s0 = inlined_call_operand.vmem [shape: f32[8,8], index: 0, kind: input, shape index: {}]
  %s1 = inlined_call_operand.vmem [shape: f32[8,8], index: 1, kind: input, shape index: {}]
  %s2 = inlined_call_operand.vmem [shape: f32[8,48], index: 2, kind: input, shape index: {}]
  %s3 = inlined_call_operand.hbm [shape: f32[8,48], index: 3, kind: output, shape index: {}]
  %s4 = sld [smem:[#allocation0]]
  $region22: #{ultimus_forward.3} parent=0
    _
  %s6 = ssub.s32 1, %s4
  %s7 = scalar_select 0, %s6, %s4
  $region1: #{ultimus_forward.3} parent=0
    #allocation2 [shape = 'u8[4096]{0}', space=vmem, size = 0x1000, scoped, tag = 'output window, operand 0, single buffered']
    #allocation3 [shape = 's32[1]{0}', space=sflag, size = 0x4, scoped, tag = 'scoped memory for ultimus_forward.3']
    %8 = vsyncpa [#allocation3], 0
    // Predicated region
    $region2: #{ultimus_forward.3} parent=1 // pred_check
      _
    $region3: #{ultimus_forward.3} parent=1 // pred_check_branch
      %10 = sbr.rel (0) target = $region5
    $region4: #{ultimus_forward.3} parent=1 // pred_region
      _
    $region5: #{ultimus_forward.3} parent=1 // pred_fallthru
      _
    // Predicated region
    $region6: #{ultimus_forward.3} parent=1 // pred_check
      _
    $region7: #{ultimus_forward.3} parent=1 // pred_check_branch
      %12 = sbr.rel (0) target = $region9
    $region8: #{ultimus_forward.3} parent=1 // pred_region
      _
    $region9: #{ultimus_forward.3} parent=1 // pred_fallthru
      _
    // Predicated region
    $region10: #{ultimus_forward.3} parent=1 // pred_check
      _
    $region11: #{ultimus_forward.3} parent=1 // pred_check_branch
      %14 = sbr.rel (0) target = $region13
    $region12: #{ultimus_forward.3} parent=1 // pred_region
      _
    $region13: #{ultimus_forward.3} parent=1 // pred_fallthru
      _
    %v15 = vld [vmem:[%s0] sm:$0xff]
    %v16 = vld [vmem:[%s1] sm:$0xff]
    %vm17 = vcmask 64512
    %v19 = vsel %vm17, %v15, 0
    %21 = vmatprep.subr.mxu0 0.0
    %22 = vmatpush1.msra.mxu0 0.0
    %23 = vmatprep.subr.mxu0 0.0
    %24 = vmatpush1.msra.mxu0 0.0
    %25 = vmatprep.subr.mxu0 0.0
    %26 = vmatpush1.msra.mxu0 0.0
    %27 = vmatprep.subr.mxu0 0.0
    %28 = vmatpush1.msra.mxu0 0.0
    %29 = vmatprep.subr.mxu0 0.0
    %30 = vmatpush1.msra.mxu0 0.0
    %31 = vmatprep.subr.mxu0 0.0
    %32 = vmatpush1.msra.mxu0 0.0
    %33 = vmatprep.subr.mxu0 0.0
    %34 = vmatpush1.msra.mxu0 0.0
    %35 = vmatprep.subr.mxu0 0.0
    %36 = vmatpush1.msra.mxu0 0.0
    %37 = vmatprep.subr.mxu0 0.0
    %38 = vmatpush1.msra.mxu0 0.0
    %39 = vmatprep.subr.mxu0 0.0
    %40 = vmatpush1.msra.mxu0 0.0
    %41 = vmatprep.subr.mxu0 0.0
    %42 = vmatpush1.msra.mxu0 0.0
    %43 = vmatprep.subr.mxu0 0.0
    %44 = vmatpush1.msra.mxu0 0.0
    %45 = vmatprep.subr.mxu0 0.0
    %46 = vmatpush1.msra.mxu0 0.0
    %47 = vmatprep.subr.mxu0 0.0
    %48 = vmatpush1.msra.mxu0 0.0
    %49 = vmatprep.subr.mxu0 0.0
    %50 = vmatpush1.msra.mxu0 0.0
    %51 = vmatprep.subr.mxu0 0.0
    %52 = vmatpush1.msra.mxu0 %v16
    %53 = vmatprep.subr.mxu0 0.0
    %54 = vmatpush2.msra.mxu0 0.0
    %55 = vmatprep.subr.mxu0 0.0
    %56 = vmatpush2.msra.mxu0 0.0
    %57 = vmatprep.subr.mxu0 0.0
    %58 = vmatpush2.msra.mxu0 0.0
    %59 = vmatprep.subr.mxu0 0.0
    %60 = vmatpush2.msra.mxu0 0.0
    %61 = vmatprep.subr.mxu0 0.0
    %62 = vmatpush2.msra.mxu0 0.0
    %63 = vmatprep.subr.mxu0 0.0
    %64 = vmatpush2.msra.mxu0 0.0
    %65 = vmatprep.subr.mxu0 0.0
    %66 = vmatpush2.msra.mxu0 0.0
    %67 = vmatprep.subr.mxu0 0.0
    %68 = vmatpush2.msra.mxu0 0.0
    %69 = vmatprep.subr.mxu0 0.0
    %70 = vmatpush2.msra.mxu0 0.0
    %71 = vmatprep.subr.mxu0 0.0
    %72 = vmatpush2.msra.mxu0 0.0
    %73 = vmatprep.subr.mxu0 0.0
    %74 = vmatpush2.msra.mxu0 0.0
    %75 = vmatprep.subr.mxu0 0.0
    %76 = vmatpush2.msra.mxu0 0.0
    %77 = vmatprep.subr.mxu0 0.0
    %78 = vmatpush2.msra.mxu0 0.0
    %79 = vmatprep.subr.mxu0 0.0
    %80 = vmatpush2.msra.mxu0 0.0
    %81 = vmatprep.subr.mxu0 0.0
    %82 = vmatpush2.msra.mxu0 0.0
    %83 = vmatprep.subr.mxu0 0.0
    %84 = vmatpush2.msra.mxu0 0.0
    %85 = vmatprep.mubr.f32.mxu0 0.0
    %86 = vmatmul.mubr.f32.gmra.mxu0 %v19
    %v87 = vpop.f32.mrf.mxu0
    %v88 = vadd.f32 0.0, %v87
    %v89 = vpop.f32.mrf.mxu0
    %90 = vdwg.mxu0
    %v91 = vld [vmem:[%s2] sm:$0xff]
    %v93 = vsel %vm17, %v88, 0
    %95 = vmatprep.subr.mxu0 0.0
    %96 = vmatpush1.msra.mxu0 0.0
    %97 = vmatprep.subr.mxu0 0.0
    %98 = vmatpush1.msra.mxu0 0.0
    %99 = vmatprep.subr.mxu0 0.0
    %100 = vmatpush1.msra.mxu0 0.0
    %101 = vmatprep.subr.mxu0 0.0
    %102 = vmatpush1.msra.mxu0 0.0
    %103 = vmatprep.subr.mxu0 0.0
    %104 = vmatpush1.msra.mxu0 0.0
    %105 = vmatprep.subr.mxu0 0.0
    %106 = vmatpush1.msra.mxu0 0.0
    %107 = vmatprep.subr.mxu0 0.0
    %108 = vmatpush1.msra.mxu0 0.0
    %109 = vmatprep.subr.mxu0 0.0
    %110 = vmatpush1.msra.mxu0 0.0
    %111 = vmatprep.subr.mxu0 0.0
    %112 = vmatpush1.msra.mxu0 0.0
    %113 = vmatprep.subr.mxu0 0.0
    %114 = vmatpush1.msra.mxu0 0.0
    %115 = vmatprep.subr.mxu0 0.0
    %116 = vmatpush1.msra.mxu0 0.0
    %117 = vmatprep.subr.mxu0 0.0
    %118 = vmatpush1.msra.mxu0 0.0
    %119 = vmatprep.subr.mxu0 0.0
    %120 = vmatpush1.msra.mxu0 0.0
    %121 = vmatprep.subr.mxu0 0.0
    %122 = vmatpush1.msra.mxu0 0.0
    %123 = vmatprep.subr.mxu0 0.0
    %124 = vmatpush1.msra.mxu0 0.0
    %125 = vmatprep.subr.mxu0 0.0
    %126 = vmatpush1.msra.mxu0 %v91
    %127 = vmatprep.subr.mxu0 0.0
    %128 = vmatpush2.msra.mxu0 0.0
    %129 = vmatprep.subr.mxu0 0.0
    %130 = vmatpush2.msra.mxu0 0.0
    %131 = vmatprep.subr.mxu0 0.0
    %132 = vmatpush2.msra.mxu0 0.0
    %133 = vmatprep.subr.mxu0 0.0
    %134 = vmatpush2.msra.mxu0 0.0
    %135 = vmatprep.subr.mxu0 0.0
    %136 = vmatpush2.msra.mxu0 0.0
    %137 = vmatprep.subr.mxu0 0.0
    %138 = vmatpush2.msra.mxu0 0.0
    %139 = vmatprep.subr.mxu0 0.0
    %140 = vmatpush2.msra.mxu0 0.0
    %141 = vmatprep.subr.mxu0 0.0
    %142 = vmatpush2.msra.mxu0 0.0
    %143 = vmatprep.subr.mxu0 0.0
    %144 = vmatpush2.msra.mxu0 0.0
    %145 = vmatprep.subr.mxu0 0.0
    %146 = vmatpush2.msra.mxu0 0.0
    %147 = vmatprep.subr.mxu0 0.0
    %148 = vmatpush2.msra.mxu0 0.0
    %149 = vmatprep.subr.mxu0 0.0
    %150 = vmatpush2.msra.mxu0 0.0
    %151 = vmatprep.subr.mxu0 0.0
    %152 = vmatpush2.msra.mxu0 0.0
    %153 = vmatprep.subr.mxu0 0.0
    %154 = vmatpush2.msra.mxu0 0.0
    %155 = vmatprep.subr.mxu0 0.0
    %156 = vmatpush2.msra.mxu0 0.0
    %157 = vmatprep.subr.mxu0 0.0
    %158 = vmatpush2.msra.mxu0 0.0
    %159 = vmatprep.mubr.f32.mxu0 0.0
    %160 = vmatmul.mubr.f32.gmra.mxu0 %v93
    %v161 = vpop.f32.mrf.mxu0
    %v162 = vadd.f32 0.0, %v161
    %v163 = vpop.f32.mrf.mxu0
    %164 = vdwg.mxu0
    %vm165 = vcmask 392192
    %166 = vst.msk [vmem:[#allocation2] sm:$0xff] %vm165, %v162
    // Predicated region
    $region14: #{ultimus_forward.3} parent=1 // pred_check
      _
    $region15: #{ultimus_forward.3} parent=1 // pred_check_branch
      %168 = sbr.rel (0) target = $region17
    $region16: #{ultimus_forward.3} parent=1 // pred_region
      %s170 = ssub.s32 128, 128
      %171 = vsyncadd [#allocation3], %s170
      %s173 = sshll.u32 [#allocation2], 4
      %s174 = int_to_ptr.vmem [resolvable:$true] %s173
      %176 = dma.vmem_to_hbm [thread:$0]  %s174, 128, %s3, [#allocation3]
    $region17: #{ultimus_forward.3} parent=1 // pred_fallthru
      _
    // Predicated region
    $region18: #{ultimus_forward.3} parent=1 // pred_check
      _
    $region19: #{ultimus_forward.3} parent=1 // pred_check_branch
      %178 = sbr.rel (0) target = $region21
    $region20: #{ultimus_forward.3} parent=1 // pred_region
      %179 = dma.done [#allocation3], 128
    $region21: #{ultimus_forward.3} parent=1 // pred_fallthru
      _
    %180 = vsyncpa [#allocation3], 1

// kernel: ultimus_forward.2
$region0: #{ultimus_forward.2}
  #allocation0 [shape = 'u32[]', space=smem, size = 0x4, offset = 0x4, fixed_abs, tag = 'smem constant byte address 0x4 - core index']
  #allocation1 [shape = 'u32[144,128]{1,0:T(1,128)}', space=vmem, size = 0x12000, scoped, tag = 'internal scratch']
  #allocation2 [shape = 'f32[8,8]{1,0:T(8,128)}', space=vmem, size = 0x1000, scoped, tag = 'scratch operand']
  %s0 = inlined_call_operand.vmem [shape: f32[8,48], index: 0, kind: input, shape index: {}]
  %s1 = inlined_call_operand.vmem [shape: f32[48,24], index: 1, kind: input, shape index: {}]
  %s2 = inlined_call_operand.vmem [shape: f32[8,8], index: 2, kind: output, shape index: {0}]
  %s3 = inlined_call_operand.vmem [shape: f32[8,8], index: 3, kind: output, shape index: {1}]
  %4 = xla_tuple %s2, %s3
  %s5 = sld [smem:[#allocation0]]
  $region34: #{ultimus_forward.2} parent=0
    _
  %s7 = ssub.s32 1, %s5
  %s8 = scalar_select 0, %s7, %s5
  // Predicated region
  $region2: #{ultimus_forward.2} parent=0 // pred_check
    _
  $region3: #{ultimus_forward.2} parent=0 // pred_check_branch
    %10 = sbr.rel (0) target = $region5
  $region4: #{ultimus_forward.2} parent=0 // pred_region
    _
  $region5: #{ultimus_forward.2} parent=0 // pred_fallthru
    _
  // Predicated region
  $region6: #{ultimus_forward.2} parent=0 // pred_check
    _
  $region7: #{ultimus_forward.2} parent=0 // pred_check_branch
    %12 = sbr.rel (0) target = $region9
  $region8: #{ultimus_forward.2} parent=0 // pred_region
    _
  $region9: #{ultimus_forward.2} parent=0 // pred_fallthru
    _
  %p13 = scmp.eq.s32.totalorder 0, 0
  // Predicated region
  $region10: #{ultimus_forward.2} parent=0 // pred_check
    %p14 = pneg %p13
  $region11: #{ultimus_forward.2} parent=0 // pred_check_branch
    %16 = sbr.rel (%p14) target = $region13
  $region12: #{ultimus_forward.2} parent=0 // pred_region
    %vm17 = vcmask 64512
    %18 = vst.msk [vmem:[#allocation2] sm:$0xff] %vm17, 0.0
  $region13: #{ultimus_forward.2} parent=0 // pred_fallthru
    _
  %v19 = vld [vmem:[%s0] sm:$0xff]
  %v20 = vld [vmem:[%s1] sm:$0xff]
  %v21 = vld [vmem:[%s1 + $0x8] sm:$0xff]
  %v22 = vld [vmem:[%s1 + $0x10] sm:$0xff]
  %v23 = vld [vmem:[%s1 + $0x18] sm:$0xff]
  %v24 = vld [vmem:[%s1 + $0x20] sm:$0xff]
  %v25 = vld [vmem:[%s1 + $0x28] sm:$0xff]
  %vm26 = vcmask 392192
  %v28 = vsel %vm26, %v19, 0
  %30 = vmatprep.subr.mxu0 0.0
  %31 = vmatpush1.msra.mxu0 0.0
  %32 = vmatprep.subr.mxu0 0.0
  %33 = vmatpush1.msra.mxu0 0.0
  %34 = vmatprep.subr.mxu0 0.0
  %35 = vmatpush1.msra.mxu0 0.0
  %36 = vmatprep.subr.mxu0 0.0
  %37 = vmatpush1.msra.mxu0 0.0
  %38 = vmatprep.subr.mxu0 0.0
  %39 = vmatpush1.msra.mxu0 0.0
  %40 = vmatprep.subr.mxu0 0.0
  %41 = vmatpush1.msra.mxu0 0.0
  %42 = vmatprep.subr.mxu0 0.0
  %43 = vmatpush1.msra.mxu0 0.0
  %44 = vmatprep.subr.mxu0 0.0
  %45 = vmatpush1.msra.mxu0 0.0
  %46 = vmatprep.subr.mxu0 0.0
  %47 = vmatpush1.msra.mxu0 0.0
  %48 = vmatprep.subr.mxu0 0.0
  %49 = vmatpush1.msra.mxu0 0.0
  %50 = vmatprep.subr.mxu0 0.0
  %51 = vmatpush1.msra.mxu0 %v25
  %52 = vmatprep.subr.mxu0 0.0
  %53 = vmatpush1.msra.mxu0 %v24
  %54 = vmatprep.subr.mxu0 0.0
  %55 = vmatpush1.msra.mxu0 %v23
  %56 = vmatprep.subr.mxu0 0.0
  %57 = vmatpush1.msra.mxu0 %v22
  %58 = vmatprep.subr.mxu0 0.0
  %59 = vmatpush1.msra.mxu0 %v21
  %60 = vmatprep.subr.mxu0 0.0
  %61 = vmatpush1.msra.mxu0 %v20
  %62 = vmatprep.subr.mxu0 0.0
  %63 = vmatpush2.msra.mxu0 0.0
  %64 = vmatprep.subr.mxu0 0.0
  %65 = vmatpush2.msra.mxu0 0.0
  %66 = vmatprep.subr.mxu0 0.0
  %67 = vmatpush2.msra.mxu0 0.0
  %68 = vmatprep.subr.mxu0 0.0
  %69 = vmatpush2.msra.mxu0 0.0
  %70 = vmatprep.subr.mxu0 0.0
  %71 = vmatpush2.msra.mxu0 0.0
  %72 = vmatprep.subr.mxu0 0.0
  %73 = vmatpush2.msra.mxu0 0.0
  %74 = vmatprep.subr.mxu0 0.0
  %75 = vmatpush2.msra.mxu0 0.0
  %76 = vmatprep.subr.mxu0 0.0
  %77 = vmatpush2.msra.mxu0 0.0
  %78 = vmatprep.subr.mxu0 0.0
  %79 = vmatpush2.msra.mxu0 0.0
  %80 = vmatprep.subr.mxu0 0.0
  %81 = vmatpush2.msra.mxu0 0.0
  %82 = vmatprep.subr.mxu0 0.0
  %83 = vmatpush2.msra.mxu0 0.0
  %84 = vmatprep.subr.mxu0 0.0
  %85 = vmatpush2.msra.mxu0 0.0
  %86 = vmatprep.subr.mxu0 0.0
  %87 = vmatpush2.msra.mxu0 0.0
  %88 = vmatprep.subr.mxu0 0.0
  %89 = vmatpush2.msra.mxu0 0.0
  %90 = vmatprep.subr.mxu0 0.0
  %91 = vmatpush2.msra.mxu0 0.0
  %92 = vmatprep.subr.mxu0 0.0
  %93 = vmatpush2.msra.mxu0 0.0
  %94 = vmatprep.mubr.f32.mxu0 0.0
  %95 = vmatmul.mubr.f32.gmra.mxu0 %v28
  %v96 = vpop.f32.mrf.mxu0
  %v97 = vadd.f32 0.0, %v96
  %v98 = vpop.f32.mrf.mxu0
  %99 = vdwg.mxu0
  %101 = vrot.lane.b32.xlu0 %v97, 112
  %v102 = vpop.permute.xlu0 %101
  %vm104 = vcmask 64512
  %105 = vst.msk [vmem:[%s2] sm:$0xff] %vm104, %v102
  %v106 = vld [vmem:[#allocation2] sm:$0xff]
  %107 = vxpose.xlu0.b32.start [1/16] %v97, 128
  %108 = vxpose.xlu0.b32.cont [2/16] 0.0, 128
  %109 = vxpose.xlu0.b32.cont [3/16] 0.0, 128
  %110 = vxpose.xlu0.b32.cont [4/16] 0.0, 128
  %111 = vxpose.xlu0.b32.cont [5/16] 0.0, 128
  %112 = vxpose.xlu0.b32.cont [6/16] 0.0, 128
  %113 = vxpose.xlu0.b32.cont [7/16] 0.0, 128
  %114 = vxpose.xlu0.b32.cont [8/16] 0.0, 128
  %115 = vxpose.xlu0.b32.cont [9/16] 0.0, 128
  %116 = vxpose.xlu0.b32.cont [10/16] 0.0, 128
  %117 = vxpose.xlu0.b32.cont [11/16] 0.0, 128
  %118 = vxpose.xlu0.b32.cont [12/16] 0.0, 128
  %119 = vxpose.xlu0.b32.cont [13/16] 0.0, 128
  %120 = vxpose.xlu0.b32.cont [14/16] 0.0, 128
  %121 = vxpose.xlu0.b32.cont [15/16] 0.0, 128
  %122 = vxpose.xlu0.b32.end [16/16] 0.0, 128
  %v123 = vpop.trf.xlu0
  %v124 = vpop.trf.xlu0
  %v125 = vpop.trf.xlu0
  %v126 = vpop.trf.xlu0
  %v127 = vpop.trf.xlu0
  %v128 = vpop.trf.xlu0
  %v129 = vpop.trf.xlu0
  %v130 = vpop.trf.xlu0
  %v131 = vpop.trf.xlu0
  %v132 = vpop.trf.xlu0
  %v133 = vpop.trf.xlu0
  %v134 = vpop.trf.xlu0
  %v135 = vpop.trf.xlu0
  %v136 = vpop.trf.xlu0
  %v137 = vpop.trf.xlu0
  %v138 = vpop.trf.xlu0
  %139 = vrot.lane.b32.xlu0 %v97, 120
  %v140 = vpop.permute.xlu0 %139
  %v143 = vsel %vm104, %v123, 0
  %145 = vmatprep.subr.mxu0 0.0
  %146 = vmatpush1.msra.mxu0 0.0
  %147 = vmatprep.subr.mxu0 0.0
  %148 = vmatpush1.msra.mxu0 0.0
  %149 = vmatprep.subr.mxu0 0.0
  %150 = vmatpush1.msra.mxu0 0.0
  %151 = vmatprep.subr.mxu0 0.0
  %152 = vmatpush1.msra.mxu0 0.0
  %153 = vmatprep.subr.mxu0 0.0
  %154 = vmatpush1.msra.mxu0 0.0
  %155 = vmatprep.subr.mxu0 0.0
  %156 = vmatpush1.msra.mxu0 0.0
  %157 = vmatprep.subr.mxu0 0.0
  %158 = vmatpush1.msra.mxu0 0.0
  %159 = vmatprep.subr.mxu0 0.0
  %160 = vmatpush1.msra.mxu0 0.0
  %161 = vmatprep.subr.mxu0 0.0
  %162 = vmatpush1.msra.mxu0 0.0
  %163 = vmatprep.subr.mxu0 0.0
  %164 = vmatpush1.msra.mxu0 0.0
  %165 = vmatprep.subr.mxu0 0.0
  %166 = vmatpush1.msra.mxu0 0.0
  %167 = vmatprep.subr.mxu0 0.0
  %168 = vmatpush1.msra.mxu0 0.0
  %169 = vmatprep.subr.mxu0 0.0
  %170 = vmatpush1.msra.mxu0 0.0
  %171 = vmatprep.subr.mxu0 0.0
  %172 = vmatpush1.msra.mxu0 0.0
  %173 = vmatprep.subr.mxu0 0.0
  %174 = vmatpush1.msra.mxu0 0.0
  %175 = vmatprep.subr.mxu0 0.0
  %176 = vmatpush1.msra.mxu0 %v140
  %177 = vmatprep.subr.mxu0 0.0
  %178 = vmatpush2.msra.mxu0 0.0
  %179 = vmatprep.subr.mxu0 0.0
  %180 = vmatpush2.msra.mxu0 0.0
  %181 = vmatprep.subr.mxu0 0.0
  %182 = vmatpush2.msra.mxu0 0.0
  %183 = vmatprep.subr.mxu0 0.0
  %184 = vmatpush2.msra.mxu0 0.0
  %185 = vmatprep.subr.mxu0 0.0
  %186 = vmatpush2.msra.mxu0 0.0
  %187 = vmatprep.subr.mxu0 0.0
  %188 = vmatpush2.msra.mxu0 0.0
  %189 = vmatprep.subr.mxu0 0.0
  %190 = vmatpush2.msra.mxu0 0.0
  %191 = vmatprep.subr.mxu0 0.0
  %192 = vmatpush2.msra.mxu0 0.0
  %193 = vmatprep.subr.mxu0 0.0
  %194 = vmatpush2.msra.mxu0 0.0
  %195 = vmatprep.subr.mxu0 0.0
  %196 = vmatpush2.msra.mxu0 0.0
  %197 = vmatprep.subr.mxu0 0.0
  %198 = vmatpush2.msra.mxu0 0.0
  %199 = vmatprep.subr.mxu0 0.0
  %200 = vmatpush2.msra.mxu0 0.0
  %201 = vmatprep.subr.mxu0 0.0
  %202 = vmatpush2.msra.mxu0 0.0
  %203 = vmatprep.subr.mxu0 0.0
  %204 = vmatpush2.msra.mxu0 0.0
  %205 = vmatprep.subr.mxu0 0.0
  %206 = vmatpush2.msra.mxu0 0.0
  %207 = vmatprep.subr.mxu0 0.0
  %208 = vmatpush2.msra.mxu0 0.0
  %209 = vmatprep.mubr.f32.mxu0 0.0
  %210 = vmatmul.mubr.f32.gmra.mxu0 %v143
  %v211 = vpop.f32.mrf.mxu0
  %v212 = vadd.f32 0.0, %v211
  %v213 = vpop.f32.mrf.mxu0
  %214 = vdwg.mxu0
  %v215 = vadd.f32 %v106, %v212
  %216 = vst.msk [vmem:[#allocation2] sm:$0xff] %vm104, %v215
  // Predicated region
  $region14: #{ultimus_forward.2} parent=0 // pred_check
    %p217 = pneg %p13
  $region15: #{ultimus_forward.2} parent=0 // pred_check_branch
    %219 = sbr.rel (%p217) target = $region17
  $region16: #{ultimus_forward.2} parent=0 // pred_region
    %v220 = vld [vmem:[#allocation2] sm:$0xff]
    %v221 = vmul.f32 %v220, 0.35355338
    %v222 = vsel %vm104, %v221, -inf
    %223 = vmax.xlane.f32.xlu0 %v222
    %v224 = vpop.xlane.xlu0 %223
    %v225 = vsub.f32 %v221, %v224
    %v226 = vmul.f32 %v225, 1.442695
    %v227 = vpow.pop %v226
    %v228 = vsel %vm104, %v227, 0.0
    %229 = vadd.xlane.f32.xlu0 %v228
    %v230 = vpop.xlane.xlu0 %229
    %v231 = vrcp.pop %v230
    %v232 = vmul.f32 %v227, %v231
    %233 = vst.msk [vmem:[%s3] sm:$0xff] %vm104, %v232
  $region17: #{ultimus_forward.2} parent=0 // pred_fallthru
    _
  // Predicated region
  $region18: #{ultimus_forward.2} parent=0 // pred_check
    _
  $region19: #{ultimus_forward.2} parent=0 // pred_check_branch
    %235 = sbr.rel (0) target = $region21
  $region20: #{ultimus_forward.2} parent=0 // pred_region
    _
  $region21: #{ultimus_forward.2} parent=0 // pred_fallthru
    _
  // Predicated region
  $region22: #{ultimus_forward.2} parent=0 // pred_check
    _
  $region23: #{ultimus_forward.2} parent=0 // pred_check_branch
    %237 = sbr.rel (0) target = $region25
  $region24: #{ultimus_forward.2} parent=0 // pred_region
    _
  $region25: #{ultimus_forward.2} parent=0 // pred_fallthru
    _
  // Predicated region
  $region26: #{ultimus_forward.2} parent=0 // pred_check
    _
  $region27: #{ultimus_forward.2} parent=0 // pred_check_branch
    %239 = sbr.rel (0) target = $region29
  $region28: #{ultimus_forward.2} parent=0 // pred_region
    _
  $region29: #{ultimus_forward.2} parent=0 // pred_fallthru
    _
  // Predicated region
  $region30: #{ultimus_forward.2} parent=0 // pred_check
    _
  $region31: #{ultimus_forward.2} parent=0 // pred_check_branch
    %241 = sbr.rel (0) target = $region33
  $region32: #{ultimus_forward.2} parent=0 // pred_region
    _
  $region33: #{ultimus_forward.2} parent=0 // pred_fallthru
    _

</llo_original>
